<compile_context>
chip_gen: v7x
topology: tpu7x:2x2x1
jax: 0.10.0
libtpu: 0.0.40
codegen_flags: <defaults>
</compile_context>

<pallas_src>
import functools

import jax
import jax.numpy as jnp
from jax.experimental import pallas as pl
from jax.experimental.pallas import tpu as pltpu


def _rmsnorm_kernel(x_ref, w_ref, o_ref, *, eps):
    """Standard path: D is already lane-dense (>=128 or the full last dim)."""
    x = x_ref[...].astype(jnp.float32)              # (tile_rows, D) f32 accum
    w = w_ref[...]                                  # (1, D), already f32
    ms = jnp.mean(x * x, axis=-1, keepdims=True)    # per-row, ragged rows are masked at writeback
    inv = jax.lax.rsqrt(ms + eps)
    o_ref[...] = (x * inv * w).astype(o_ref.dtype)


def _rmsnorm_folded_kernel(x_ref, w_ref, m_ref, o_ref, *, eps, inv_d):
    """Small-D path: g = 128 // D logical rows folded into the lane axis.

    The segmented (per-group) sum of squares is computed with a single small
    MXU matmul against a block-diagonal ones matrix, which both reduces and
    broadcasts within each group while keeping every vector op lane-dense.
    """
    x = x_ref[...].astype(jnp.float32)              # (tile_rows, g*D) = (tile, 128)
    w = w_ref[...]                                  # (1, g*D), f32 (weight tiled g times)
    ss = jnp.dot(x * x, m_ref[...],
                 preferred_element_type=jnp.float32)  # segmented sum, broadcast in-group
    inv = jax.lax.rsqrt(ss * inv_d + eps)
    o_ref[...] = (x * inv * w).astype(o_ref.dtype)


def _choose_tile_rows(rows, d, itemsize, *, target_buffer_bytes=2 << 20,
                      min_grid_steps=4):
    """Sublane-aligned row tile: ~2 MiB per buffer, and >= min_grid_steps grid
    steps when possible (so v7x's 2 TensorCores both get work)."""
    sublane = max(8, 32 // itemsize)                # 8 f32, 16 bf16, 32 int8
    tile = max(1, target_buffer_bytes // max(1, d * itemsize))
    tile = min(tile, 1024, pl.cdiv(rows, min_grid_steps))
    tile = max(sublane, (tile // sublane) * sublane)
    if tile >= rows:
        return rows                                 # full leading dim is always legal
    return tile


def rmsnorm(x, weight, eps=1e-5):
    """x: (..., D); weight: (D,). Returns same shape/dtype as x."""
    orig_shape = x.shape
    D = orig_shape[-1]
    rows = 1
    for s in orig_shape[:-1]:
        rows *= s

    itemsize = jnp.dtype(x.dtype).itemsize
    w_f32 = weight.astype(jnp.float32)              # cast hoisted out of the kernel
    x2 = x.reshape(rows, D)

    # Lane-density: fold g rows per block row when D < 128 and divides 128.
    fold = (D < 128) and (128 % D == 0)
    if fold:
        g = 128 // D
        rows_pad = pl.cdiv(rows, g) * g
        if rows_pad != rows:                        # tiny (< g rows) zero pad
            x2 = jnp.concatenate(
                [x2, jnp.zeros((rows_pad - rows, D), dtype=x2.dtype)], axis=0)
        rows_eff = rows_pad // g
        d_eff = g * D
        x_in = x2.reshape(rows_eff, d_eff)
        w_in = jnp.tile(w_f32, g).reshape(1, d_eff)
        seg = jnp.arange(d_eff, dtype=jnp.int32) // D
        m_blockdiag = (seg[:, None] == seg[None, :]).astype(jnp.float32)
    else:
        # TODO(synk): D < 128 with 128 % D != 0 still takes the masked-store path.
        rows_eff, d_eff = rows, D
        x_in = x2
        w_in = w_f32.reshape(1, D)

    tile_rows = _choose_tile_rows(rows_eff, d_eff, itemsize)
    grid = (pl.cdiv(rows_eff, tile_rows),)          # ragged last block masked by Pallas

    # VMEM budget: double-buffered in/out tiles + ~3 full-tile f32 intermediates
    # (x_f32, x*x, pre-cast result) + weights/constants + headroom, capped at
    # 75% of physical VMEM (v7x 64 MiB -> ~48 MiB; v5e/v6e 128 MiB -> ~96 MiB).
    tile_elems = tile_rows * d_eff
    needed = (2 * 2 * tile_elems * itemsize
              + 3 * tile_elems * 4
              + 2 * d_eff * 4
              + (2 * d_eff * d_eff * 4 if fold else 0)
              + (4 << 20))
    try:
        phys_vmem = int(pltpu.get_tpu_info().vmem_capacity_bytes)
    except Exception:
        phys_vmem = 64 << 20                        # assume the smallest (v7x)
    vmem_limit = int(min(max(needed, 16 << 20), (phys_vmem * 3) // 4))

    cost = pl.CostEstimate(
        flops=5 * rows_eff * d_eff + (2 * rows_eff * d_eff * d_eff if fold else 0),
        transcendentals=rows_eff,
        bytes_accessed=2 * rows_eff * d_eff * itemsize + d_eff * 4,
    )

    if fold:
        kernel = functools.partial(_rmsnorm_folded_kernel, eps=float(eps),
                                   inv_d=1.0 / float(D))
        in_specs = [
            pl.BlockSpec((tile_rows, d_eff), lambda i: (i, 0)),
            pl.BlockSpec((1, d_eff), lambda i: (0, 0)),
            pl.BlockSpec((d_eff, d_eff), lambda i: (0, 0)),
        ]
        operands = (x_in, w_in, m_blockdiag)
    else:
        kernel = functools.partial(_rmsnorm_kernel, eps=float(eps))
        in_specs = [
            pl.BlockSpec((tile_rows, d_eff), lambda i: (i, 0)),
            pl.BlockSpec((1, d_eff), lambda i: (0, 0)),
        ]
        operands = (x_in, w_in)

    out = pl.pallas_call(
        kernel,
        out_shape=jax.ShapeDtypeStruct((rows_eff, d_eff), x.dtype),
        grid_spec=pltpu.PrefetchScalarGridSpec(
            num_scalar_prefetch=0,
            grid=grid,
            in_specs=in_specs,
            out_specs=pl.BlockSpec((tile_rows, d_eff), lambda i: (i, 0)),
        ),
        compiler_params=pltpu.CompilerParams(
            dimension_semantics=("parallel",),
            vmem_limit_bytes=vmem_limit,
        ),
        cost_estimate=cost,
    )(*operands)

    if fold:
        out = out.reshape(rows_eff * (d_eff // D), D)[:rows]
    return out.reshape(orig_shape)


def rmsnorm_ref(x, weight, eps=1e-5):
    ms = jnp.mean(x.astype(jnp.float32) ** 2, axis=-1, keepdims=True)
    return (x.astype(jnp.float32) * jax.lax.rsqrt(ms + eps) * weight).astype(x.dtype)


if __name__ == "__main__":
    key = jax.random.PRNGKey(0)
    k1, k2 = jax.random.split(key)

    # 1) Small-D demo shape from the module usage (exercises the folded,
    #    lane-dense path): batch=2, seq=8, d_model=32.
    B, L, D = 2, 8, 32
    x = jax.random.normal(k1, (B, L, D), dtype=jnp.float32)
    weight = jnp.ones((D,), dtype=jnp.float32)      # nn.Parameter(torch.ones(d_model))
    y = jax.block_until_ready(rmsnorm(x, weight, eps=1e-5))
    y_ref = rmsnorm_ref(x, weight, eps=1e-5)
    assert y.shape == x.shape and y.dtype == x.dtype
    # MXU segmented-sum may use reduced-precision passes; tolerance covers it.
    assert jnp.allclose(y, y_ref, atol=2e-3, rtol=2e-3)

    # 2) Lane-dense d_model (standard path, multi-step grid).
    D2 = 128
    x2 = jax.random.normal(k2, (B, L, D2), dtype=jnp.float32)
    w2 = jnp.ones((D2,), dtype=jnp.float32)
    y2 = jax.block_until_ready(rmsnorm(x2, w2, eps=1e-5))
    y2_ref = rmsnorm_ref(x2, w2, eps=1e-5)
    assert y2.shape == x2.shape and y2.dtype == x2.dtype
    assert jnp.allclose(y2, y2_ref, atol=1e-5, rtol=1e-5)

    print("KERNEL_OK")
</pallas_src>

<mosaic_0001>
module attributes {stable_mosaic.version = 11 : i64} {
  func.func @_rmsnorm_folded_kernel(%arg0: i32, %arg1: memref<4x128xf32, #tpu.memory_space<vmem>>, %arg2: memref<1x128xf32, #tpu.memory_space<vmem>>, %arg3: memref<128x128xf32, #tpu.memory_space<vmem>>, %arg4: memref<4x128xf32, #tpu.memory_space<vmem>>) attributes {dimension_semantics = [#tpu.dimension_semantics<parallel>], iteration_bounds = array<i64: 1>, scalar_prefetch = 0 : i64, scratch_operands = 0 : i64, tpu.core_type = #tpu.core_type<tc>, window_params = [{transform_indices = @transform_0, window_bounds = array<i64: 4, 128>}, {pipeline_mode = #tpu.pipeline_mode<synchronous>, transform_indices = @transform_1, window_bounds = array<i64: 1, 128>}, {pipeline_mode = #tpu.pipeline_mode<synchronous>, transform_indices = @transform_2, window_bounds = array<i64: 128, 128>}, {transform_indices = @transform_3, window_bounds = array<i64: 4, 128>}]} {
    %c0 = arith.constant 0 : index
    %c0_0 = arith.constant 0 : index
    %0 = vector.load %arg1[%c0, %c0_0] : memref<4x128xf32, #tpu.memory_space<vmem>>, vector<4x128xf32>
    %c0_1 = arith.constant 0 : index
    %c0_2 = arith.constant 0 : index
    %1 = vector.load %arg2[%c0_1, %c0_2] : memref<1x128xf32, #tpu.memory_space<vmem>>, vector<1x128xf32>
    %2 = arith.mulf %0, %0 : vector<4x128xf32>
    %c0_3 = arith.constant 0 : index
    %c0_4 = arith.constant 0 : index
    %3 = vector.load %arg3[%c0_3, %c0_4] : memref<128x128xf32, #tpu.memory_space<vmem>>, vector<128x128xf32>
    %cst = arith.constant dense<0.000000e+00> : vector<4x128xf32>
    %4 = tpu.matmul %2, %3, %cst {dimension_numbers = #tpu.dot_dimension_numbers<[1], [0], [0], [1], [0, 0, 1, 1], [], []>} : vector<4x128xf32>, vector<128x128xf32>, vector<4x128xf32> -> vector<4x128xf32>
    %cst_5 = arith.constant 3.125000e-02 : f32
    %5 = vector.broadcast %cst_5 : f32 to vector<4x128xf32>
    %6 = arith.mulf %4, %5 : vector<4x128xf32>
    %cst_6 = arith.constant 9.99999974E-6 : f32
    %7 = vector.broadcast %cst_6 : f32 to vector<4x128xf32>
    %8 = arith.addf %6, %7 : vector<4x128xf32>
    %9 = math.rsqrt %8 : vector<4x128xf32>
    %10 = arith.mulf %0, %9 : vector<4x128xf32>
    %11 = vector.broadcast %1 : vector<1x128xf32> to vector<4x128xf32>
    %12 = arith.mulf %10, %11 : vector<4x128xf32>
    %c0_7 = arith.constant 0 : index
    %c0_8 = arith.constant 0 : index
    %13 = vector.load %arg4[%c0_7, %c0_8] : memref<4x128xf32, #tpu.memory_space<vmem>>, vector<4x128xf32>
    tpu.vector_store %arg4[%c0_7, %c0_8], %12 {strides = array<i32>} : memref<4x128xf32, #tpu.memory_space<vmem>>, vector<4x128xf32>,
    return
  }
  func.func @transform_0(%arg0: i32) -> (i32, i32) {
    %c0_i32 = arith.constant 0 : i32
    %c0_i32_0 = arith.constant 0 : i32
    return %arg0, %c0_i32 : i32, i32
  }
  func.func @transform_1(%arg0: i32) -> (i32, i32) {
    %c0_i32 = arith.constant 0 : i32
    %c0_i32_0 = arith.constant 0 : i32
    %c0_i32_1 = arith.constant 0 : i32
    return %c0_i32, %c0_i32_0 : i32, i32
  }
  func.func @transform_2(%arg0: i32) -> (i32, i32) {
    %c0_i32 = arith.constant 0 : i32
    %c0_i32_0 = arith.constant 0 : i32
    %c0_i32_1 = arith.constant 0 : i32
    return %c0_i32, %c0_i32_0 : i32, i32
  }
  func.func @transform_3(%arg0: i32) -> (i32, i32) {
    %c0_i32 = arith.constant 0 : i32
    %c0_i32_0 = arith.constant 0 : i32
    return %arg0, %c0_i32 : i32, i32
  }
}

</mosaic_0001>

<llo_original>
// kernel: tpu_custom_call.1
$region0: #{tpu_custom_call.1}
  #allocation0 [shape = 'u32[]', space=smem, size = 0x4, offset = 0x4, fixed_abs, tag = 'smem constant byte address 0x4 - core index']
  #allocation1 [shape = 'u32[144,128]{1,0:T(1,128)}', space=vmem, size = 0x12000, scoped, tag = 'internal scratch']
  %s0 = inlined_call_operand.hbm [shape: f32[4,128], index: 0, kind: input, shape index: {}]
  %s1 = inlined_call_operand.vmem [shape: f32[1,128], index: 1, kind: input, shape index: {}]
  %s2 = inlined_call_operand.hbm [shape: f32[128,128], index: 2, kind: input, shape index: {}]
  %s3 = inlined_call_operand.hbm [shape: f32[4,128], index: 3, kind: output, shape index: {}]
  %s4 = sld [smem:[#allocation0]]
  $region30: #{tpu_custom_call.1} parent=0
    _
  %s6 = ssub.s32 1, %s4
  %s7 = scalar_select 0, %s6, %s4
  $region1: #{tpu_custom_call.1} parent=0
    #allocation2 [shape = 'u8[2048]{0}', space=vmem, size = 0x800, scoped, tag = 'input window, operand 0, single buffered']
    #allocation3 [shape = 's32[1]{0}', space=sflag, size = 0x4, scoped, tag = 'scoped memory for tpu_custom_call.1']
    #allocation4 [shape = 's32[1]{0}', space=sflag, size = 0x4, scoped, tag = 'scoped memory for tpu_custom_call.1']
    #allocation5 [shape = 'u8[65536]{0}', space=vmem, size = 0x10000, scoped, tag = 'input window, operand 2, single buffered']
    #allocation6 [shape = 's32[1]{0}', space=sflag, size = 0x4, scoped, tag = 'scoped memory for tpu_custom_call.1']
    #allocation7 [shape = 'u8[2048]{0}', space=vmem, size = 0x800, scoped, tag = 'output window, operand 0, single buffered']
    %8 = vsyncpa [#allocation3], 0
    %9 = vsyncpa [#allocation6], 0
    %10 = vsyncpa [#allocation4], 0
    // Predicated region
    $region2: #{tpu_custom_call.1} parent=1 // pred_check
      _
    $region3: #{tpu_custom_call.1} parent=1 // pred_check_branch
      %12 = sbr.rel (0) target = $region5
    $region4: #{tpu_custom_call.1} parent=1 // pred_region
      %s14 = ssub.s32 64, 64
      %15 = vsyncadd [#allocation3], %s14
      %s17 = sshll.u32 [#allocation2], 4
      %s18 = int_to_ptr.vmem [resolvable:$true] %s17
      %20 = dma.hbm_to_vmem [thread:$0]  %s0, 64, %s18, [#allocation3]
    $region5: #{tpu_custom_call.1} parent=1 // pred_fallthru
      _
    // Predicated region
    $region6: #{tpu_custom_call.1} parent=1 // pred_check
      _
    $region7: #{tpu_custom_call.1} parent=1 // pred_check_branch
      %22 = sbr.rel (0) target = $region9
    $region8: #{tpu_custom_call.1} parent=1 // pred_region
      _
    $region9: #{tpu_custom_call.1} parent=1 // pred_fallthru
      _
    // Predicated region
    $region10: #{tpu_custom_call.1} parent=1 // pred_check
      _
    $region11: #{tpu_custom_call.1} parent=1 // pred_check_branch
      %24 = sbr.rel (0) target = $region13
    $region12: #{tpu_custom_call.1} parent=1 // pred_region
      %s26 = ssub.s32 2048, 2048
      %27 = vsyncadd [#allocation6], %s26
      %s28 = sshll.u32 [#allocation5], 4
      %s29 = int_to_ptr.vmem [resolvable:$true] %s28
      %34 = dma.hbm_to_vmem [thread:$0]  %s2, 2048, %s29, [#allocation6], 128, 128, 8
    $region13: #{tpu_custom_call.1} parent=1 // pred_fallthru
      _
    // Predicated region
    $region14: #{tpu_custom_call.1} parent=1 // pred_check
      _
    $region15: #{tpu_custom_call.1} parent=1 // pred_check_branch
      %36 = sbr.rel (0) target = $region17
    $region16: #{tpu_custom_call.1} parent=1 // pred_region
      %37 = dma.done [#allocation3], 64
    $region17: #{tpu_custom_call.1} parent=1 // pred_fallthru
      _
    // Predicated region
    $region18: #{tpu_custom_call.1} parent=1 // pred_check
      _
    $region19: #{tpu_custom_call.1} parent=1 // pred_check_branch
      %39 = sbr.rel (0) target = $region21
    $region20: #{tpu_custom_call.1} parent=1 // pred_region
      %40 = dma.done [#allocation6], 2048
    $region21: #{tpu_custom_call.1} parent=1 // pred_fallthru
      _
    %v41 = vld [vmem:[#allocation2] sm:$0xf]
    %v42 = vld [vmem:[%s1] sm:$0x1]
    %v43 = vmul.f32 %v41, %v41
    %v44 = vld [vmem:[#allocation5] sm:$0xff]
    %v45 = vld [vmem:[#allocation5 + $0x8] sm:$0xff]
    %v46 = vld [vmem:[#allocation5 + $0x10] sm:$0xff]
    %v47 = vld [vmem:[#allocation5 + $0x18] sm:$0xff]
    %v48 = vld [vmem:[#allocation5 + $0x20] sm:$0xff]
    %v49 = vld [vmem:[#allocation5 + $0x28] sm:$0xff]
    %v50 = vld [vmem:[#allocation5 + $0x30] sm:$0xff]
    %v51 = vld [vmem:[#allocation5 + $0x38] sm:$0xff]
    %v52 = vld [vmem:[#allocation5 + $0x40] sm:$0xff]
    %v53 = vld [vmem:[#allocation5 + $0x48] sm:$0xff]
    %v54 = vld [vmem:[#allocation5 + $0x50] sm:$0xff]
    %v55 = vld [vmem:[#allocation5 + $0x58] sm:$0xff]
    %v56 = vld [vmem:[#allocation5 + $0x60] sm:$0xff]
    %v57 = vld [vmem:[#allocation5 + $0x68] sm:$0xff]
    %v58 = vld [vmem:[#allocation5 + $0x70] sm:$0xff]
    %v59 = vld [vmem:[#allocation5 + $0x78] sm:$0xff]
    %60 = vmatprep.subr.mxu0 0.0
    %61 = vmatpush1.msra.mxu0 %v44
    %62 = vmatprep.subr.mxu0 0.0
    %63 = vmatpush1.msra.mxu0 %v45
    %64 = vmatprep.subr.mxu0 0.0
    %65 = vmatpush1.msra.mxu0 %v46
    %66 = vmatprep.subr.mxu0 0.0
    %67 = vmatpush1.msra.mxu0 %v47
    %68 = vmatprep.subr.mxu0 0.0
    %69 = vmatpush1.msra.mxu0 %v48
    %70 = vmatprep.subr.mxu0 0.0
    %71 = vmatpush1.msra.mxu0 %v49
    %72 = vmatprep.subr.mxu0 0.0
    %73 = vmatpush1.msra.mxu0 %v50
    %74 = vmatprep.subr.mxu0 0.0
    %75 = vmatpush1.msra.mxu0 %v51
    %76 = vmatprep.subr.mxu0 0.0
    %77 = vmatpush1.msra.mxu0 %v52
    %78 = vmatprep.subr.mxu0 0.0
    %79 = vmatpush1.msra.mxu0 %v53
    %80 = vmatprep.subr.mxu0 0.0
    %81 = vmatpush1.msra.mxu0 %v54
    %82 = vmatprep.subr.mxu0 0.0
    %83 = vmatpush1.msra.mxu0 %v55
    %84 = vmatprep.subr.mxu0 0.0
    %85 = vmatpush1.msra.mxu0 %v56
    %86 = vmatprep.subr.mxu0 0.0
    %87 = vmatpush1.msra.mxu0 %v57
    %88 = vmatprep.subr.mxu0 0.0
    %89 = vmatpush1.msra.mxu0 %v58
    %90 = vmatprep.subr.mxu0 0.0
    %91 = vmatpush1.msra.mxu0 %v59
    %92 = vmatprep.subr.mxu0 0.0
    %93 = vmatpush1.msra.mxu0 0.0
    %94 = vmatprep.subr.mxu0 0.0
    %95 = vmatpush1.msra.mxu0 0.0
    %96 = vmatprep.subr.mxu0 0.0
    %97 = vmatpush1.msra.mxu0 0.0
    %98 = vmatprep.subr.mxu0 0.0
    %99 = vmatpush1.msra.mxu0 0.0
    %100 = vmatprep.subr.mxu0 0.0
    %101 = vmatpush1.msra.mxu0 0.0
    %102 = vmatprep.subr.mxu0 0.0
    %103 = vmatpush1.msra.mxu0 0.0
    %104 = vmatprep.subr.mxu0 0.0
    %105 = vmatpush1.msra.mxu0 0.0
    %106 = vmatprep.subr.mxu0 0.0
    %107 = vmatpush1.msra.mxu0 0.0
    %108 = vmatprep.subr.mxu0 0.0
    %109 = vmatpush1.msra.mxu0 0.0
    %110 = vmatprep.subr.mxu0 0.0
    %111 = vmatpush1.msra.mxu0 0.0
    %112 = vmatprep.subr.mxu0 0.0
    %113 = vmatpush1.msra.mxu0 0.0
    %114 = vmatprep.subr.mxu0 0.0
    %115 = vmatpush1.msra.mxu0 0.0
    %116 = vmatprep.subr.mxu0 0.0
    %117 = vmatpush1.msra.mxu0 0.0
    %118 = vmatprep.subr.mxu0 0.0
    %119 = vmatpush1.msra.mxu0 0.0
    %120 = vmatprep.subr.mxu0 0.0
    %121 = vmatpush1.msra.mxu0 0.0
    %122 = vmatprep.subr.mxu0 0.0
    %123 = vmatpush1.msra.mxu0 0.0
    %124 = vmatprep.mubr.f32.mxu0 0.0
    %125 = vmatmul.mubr.f32.gmra.mrb[0].mxu0 %v43
    %v126 = vpop.f32.mrb[0].mxu0
    %v127 = vadd.f32 0.0, %v126
    %v128 = vpop.f32.mrb[0].mxu0
    %129 = vdwg.mxu0
    %v130 = vmul.f32 %v127, 0.03125
    %v131 = vadd.f32 %v130, 1e-05
    %v132 = vrsqrt.pop %v131
    %v133 = vmul.f32 %v41, %v132
    %v135 = vlaneseq
    %v136 = vshrl.u32 %v135, 7
    %v137 = vsub.s32 0, %v136
    %v138 = vrot.slane %v42, %v137
    %v140 = vmul.f32 %v133, %v138
    %141 = vst [vmem:[#allocation7] sm:$0xf] %v140
    // Predicated region
    $region22: #{tpu_custom_call.1} parent=1 // pred_check
      _
    $region23: #{tpu_custom_call.1} parent=1 // pred_check_branch
      %143 = sbr.rel (0) target = $region25
    $region24: #{tpu_custom_call.1} parent=1 // pred_region
      %s145 = ssub.s32 64, 64
      %146 = vsyncadd [#allocation4], %s145
      %s148 = sshll.u32 [#allocation7], 4
      %s149 = int_to_ptr.vmem [resolvable:$true] %s148
      %151 = dma.vmem_to_hbm [thread:$0]  %s149, 64, %s3, [#allocation4]
    $region25: #{tpu_custom_call.1} parent=1 // pred_fallthru
      _
    // Predicated region
    $region26: #{tpu_custom_call.1} parent=1 // pred_check
      _
    $region27: #{tpu_custom_call.1} parent=1 // pred_check_branch
      %153 = sbr.rel (0) target = $region29
    $region28: #{tpu_custom_call.1} parent=1 // pred_region
      %154 = dma.done [#allocation4], 64
    $region29: #{tpu_custom_call.1} parent=1 // pred_fallthru
      _
    %155 = vsyncpa [#allocation3], 1
    %156 = vsyncpa [#allocation6], 1
    %157 = vsyncpa [#allocation4], 1

</llo_original>
